<compile_context>
chip_gen: v7x
topology: tpu7x:2x2x1
jax: 0.10.0
libtpu: 0.0.40
codegen_flags: <defaults>
</compile_context>

<pallas_src>
import jax
import jax.numpy as jnp
from jax.experimental import pallas as pl
from jax.experimental.pallas import tpu as pltpu

LANE = 128        # TPU lane width (last-dim tiling unit)
ROW_TILE = 16     # native bf16 sublane tile (2 rows / sublane)


def _round_up(x, m):
    return (x + m - 1) // m * m


def _linear_kernel(x_ref, w_ref, b_ref, o_ref):
    # Cast activations to bf16 in-register (no extra HBM pass in the wrapper),
    # MXU matmul with f32 accumulation, f32 bias add, lane-dense f32 store.
    x_bf16 = x_ref[...].astype(jnp.bfloat16)
    acc = jnp.dot(x_bf16, w_ref[...], preferred_element_type=jnp.float32)
    o_ref[...] = (acc + b_ref[...]).astype(o_ref.dtype)


def prepare_params(weight, bias, compute_dtype=jnp.bfloat16):
    """One-time param prep: transpose to [hidden, classes] and pad classes to 128.

    Args:
      weight: [num_classes, hidden]  (PyTorch nn.Linear layout)
      bias:   [num_classes]
    Returns:
      w_pad: [hidden, nc_pad] compute_dtype (zero-padded columns)
      b_pad: [1, nc_pad] float32 (zero-padded)
    """
    num_classes, hidden = weight.shape
    nc_pad = _round_up(num_classes, LANE)
    w_pad = jnp.zeros((hidden, nc_pad), dtype=compute_dtype)
    w_pad = w_pad.at[:, :num_classes].set(weight.T.astype(compute_dtype))
    b_pad = jnp.zeros((1, nc_pad), dtype=jnp.float32)
    b_pad = b_pad.at[:, :num_classes].set(bias.astype(jnp.float32))
    return w_pad, b_pad


def _choose_tm(batch, hidden, nc_pad, x_itemsize, vmem_block_budget=20 << 20):
    """Largest batch tile (multiple of 16) whose x/out double buffers fit the budget."""
    per_row = 2 * hidden * x_itemsize + 2 * nc_pad * 4   # x dbl-buf + out dbl-buf (f32)
    tm = max(ROW_TILE, (vmem_block_budget // per_row) // ROW_TILE * ROW_TILE)
    # Never larger than the (rounded-up) batch itself.
    tm = min(tm, _round_up(batch, ROW_TILE))
    # Keep >= 2 balanced tiles for mid/large batches so both v7x TCs get work.
    if batch > 64:
        tm = min(tm, _round_up(pl.cdiv(batch, 2), ROW_TILE))
    return tm


def sentiment_classifier_forward(x, w_pad, b_pad, num_classes, *, tm=None):
    """Forward of SentimentClassifier: x @ W.T + b.

    Args:
      x:      [batch, hidden] float32 (cast to bf16 inside the kernel)
      w_pad:  [hidden, nc_pad] (from prepare_params)
      b_pad:  [1, nc_pad] float32 (from prepare_params)
      num_classes: true number of classes (output sliced back to this width)
    Returns:
      [batch, num_classes] float32
    """
    batch, hidden = x.shape
    nc_pad = w_pad.shape[1]

    if tm is None:
        tm = _choose_tm(batch, hidden, nc_pad, x.dtype.itemsize)
    tm = _round_up(max(tm, ROW_TILE), ROW_TILE)

    grid = (pl.cdiv(batch, tm),)   # partial last block is masked by Pallas

    # Right-sized VMEM request from the actual block footprint (+ headroom),
    # capped well under v7x's 64 MiB per-TC physical VMEM.
    block_bytes = (2 * tm * hidden * x.dtype.itemsize      # x double buffer
                   + 2 * tm * nc_pad * 4                   # out double buffer (f32)
                   + 2 * hidden * nc_pad * w_pad.dtype.itemsize  # resident weight
                   + 2 * 8 * nc_pad * 4)                   # bias (sublane-padded)
    vmem_limit = int(min(48 << 20, max(block_bytes + (4 << 20), 16 << 20)))

    out = pl.pallas_call(
        _linear_kernel,
        out_shape=jax.ShapeDtypeStruct((batch, nc_pad), jnp.float32),
        grid_spec=pltpu.PrefetchScalarGridSpec(
            num_scalar_prefetch=0,
            grid=grid,
            in_specs=[
                # x: streamed + double-buffered over the batch grid axis.
                pl.BlockSpec((tm, hidden), lambda i: (i, 0)),
                # weight: constant block index -> DMA'd once, resident in VMEM.
                pl.BlockSpec((hidden, nc_pad), lambda i: (0, 0)),
                # bias: constant block index -> resident in VMEM.
                pl.BlockSpec((1, nc_pad), lambda i: (0, 0)),
            ],
            out_specs=pl.BlockSpec((tm, nc_pad), lambda i: (i, 0)),
        ),
        compiler_params=pltpu.CompilerParams(
            dimension_semantics=("parallel",),   # batch tiles sharded across TCs (v7x)
            vmem_limit_bytes=vmem_limit,
        ),
    )(x, w_pad, b_pad)

    return out[:, :num_classes]


if __name__ == "__main__":
    key = jax.random.PRNGKey(0)
    k_x, k_w, k_b = jax.random.split(key, 3)

    batch = 2
    hidden_size = 32
    num_classes = 4

    x = jax.random.normal(k_x, (batch, hidden_size), dtype=jnp.float32)
    # Deterministic synthetic parameters (shapes match nn.Linear(hidden, classes)).
    weight = jax.random.normal(k_w, (num_classes, hidden_size), dtype=jnp.float32) * 0.02
    bias = jax.random.normal(k_b, (num_classes,), dtype=jnp.float32) * 0.02

    # One-time parameter prep (transpose + lane padding) outside the hot path.
    w_pad, b_pad = prepare_params(weight, bias)

    out = sentiment_classifier_forward(x, w_pad, b_pad, num_classes)
    jax.block_until_ready(out)
    assert out.shape == (batch, num_classes)

    # Reference with matching bf16 operand rounding (f32 accumulation), tight tolerance.
    x_bf = x.astype(jnp.bfloat16).astype(jnp.float32)
    w_bf = weight.astype(jnp.bfloat16).astype(jnp.float32)
    ref_bf = x_bf @ w_bf.T + bias
    assert jnp.allclose(out, ref_bf, atol=1e-4, rtol=1e-4)

    # Loose check against the pure-f32 nn.Linear reference (bf16 rounding of operands).
    ref_f32 = x @ weight.T + bias
    assert jnp.allclose(out, ref_f32, atol=2e-2, rtol=2e-2)

    print("KERNEL_OK")
</pallas_src>

<mosaic_0001>
module attributes {stable_mosaic.version = 11 : i64} {
  func.func @_linear_kernel(%arg0: i32, %arg1: memref<16x32xf32, #tpu.memory_space<vmem>>, %arg2: memref<32x128xbf16, #tpu.memory_space<vmem>>, %arg3: memref<1x128xf32, #tpu.memory_space<vmem>>, %arg4: memref<16x128xf32, #tpu.memory_space<vmem>>) attributes {dimension_semantics = [#tpu.dimension_semantics<parallel>], iteration_bounds = array<i64: 1>, scalar_prefetch = 0 : i64, scratch_operands = 0 : i64, tpu.core_type = #tpu.core_type<tc>, window_params = [{transform_indices = @transform_0, window_bounds = array<i64: 16, 32>}, {pipeline_mode = #tpu.pipeline_mode<synchronous>, transform_indices = @transform_1, window_bounds = array<i64: 32, 128>}, {pipeline_mode = #tpu.pipeline_mode<synchronous>, transform_indices = @transform_2, window_bounds = array<i64: 1, 128>}, {transform_indices = @transform_3, window_bounds = array<i64: 16, 128>}]} {
    %c0 = arith.constant 0 : index
    %c0_0 = arith.constant 0 : index
    %0 = vector.load %arg1[%c0, %c0_0] : memref<16x32xf32, #tpu.memory_space<vmem>>, vector<16x32xf32>
    %1 = arith.truncf %0 : vector<16x32xf32> to vector<16x32xbf16>
    %c0_1 = arith.constant 0 : index
    %c0_2 = arith.constant 0 : index
    %2 = vector.load %arg2[%c0_1, %c0_2] : memref<32x128xbf16, #tpu.memory_space<vmem>>, vector<32x128xbf16>
    %cst = arith.constant dense<0.000000e+00> : vector<16x128xf32>
    %3 = tpu.matmul %1, %2, %cst {dimension_numbers = #tpu.dot_dimension_numbers<[1], [0], [0], [1], [0, 0, 1, 1], [], []>} : vector<16x32xbf16>, vector<32x128xbf16>, vector<16x128xf32> -> vector<16x128xf32>
    %c0_3 = arith.constant 0 : index
    %c0_4 = arith.constant 0 : index
    %4 = vector.load %arg3[%c0_3, %c0_4] : memref<1x128xf32, #tpu.memory_space<vmem>>, vector<1x128xf32>
    %5 = vector.broadcast %4 : vector<1x128xf32> to vector<16x128xf32>
    %6 = arith.addf %3, %5 : vector<16x128xf32>
    %c0_5 = arith.constant 0 : index
    %c0_6 = arith.constant 0 : index
    %7 = vector.load %arg4[%c0_5, %c0_6] : memref<16x128xf32, #tpu.memory_space<vmem>>, vector<16x128xf32>
    tpu.vector_store %arg4[%c0_5, %c0_6], %6 {strides = array<i32>} : memref<16x128xf32, #tpu.memory_space<vmem>>, vector<16x128xf32>,
    return
  }
  func.func @transform_0(%arg0: i32) -> (i32, i32) {
    %c0_i32 = arith.constant 0 : i32
    %c0_i32_0 = arith.constant 0 : i32
    return %arg0, %c0_i32 : i32, i32
  }
  func.func @transform_1(%arg0: i32) -> (i32, i32) {
    %c0_i32 = arith.constant 0 : i32
    %c0_i32_0 = arith.constant 0 : i32
    %c0_i32_1 = arith.constant 0 : i32
    return %c0_i32, %c0_i32_0 : i32, i32
  }
  func.func @transform_2(%arg0: i32) -> (i32, i32) {
    %c0_i32 = arith.constant 0 : i32
    %c0_i32_0 = arith.constant 0 : i32
    %c0_i32_1 = arith.constant 0 : i32
    return %c0_i32, %c0_i32_0 : i32, i32
  }
  func.func @transform_3(%arg0: i32) -> (i32, i32) {
    %c0_i32 = arith.constant 0 : i32
    %c0_i32_0 = arith.constant 0 : i32
    return %arg0, %c0_i32 : i32, i32
  }
}

</mosaic_0001>

<llo_original>
// kernel: tpu_custom_call.1
$region0: #{tpu_custom_call.1}
  #allocation0 [shape = 'u32[]', space=smem, size = 0x4, offset = 0x4, fixed_abs, tag = 'smem constant byte address 0x4 - core index']
  #allocation1 [shape = 'u32[144,128]{1,0:T(1,128)}', space=vmem, size = 0x12000, scoped, tag = 'internal scratch']
  %s0 = inlined_call_operand.hbm [shape: f32[2,32], index: 0, kind: input, shape index: {}]
  %s1 = inlined_call_operand.hbm [shape: bf16[32,128], index: 1, kind: input, shape index: {}]
  %s2 = inlined_call_operand.vmem [shape: f32[1,128], index: 2, kind: input, shape index: {}]
  %s3 = inlined_call_operand.hbm [shape: f32[2,128], index: 3, kind: output, shape index: {}]
  %s4 = sld [smem:[#allocation0]]
  $region30: #{tpu_custom_call.1} parent=0
    _
  %s6 = ssub.s32 1, %s4
  %s7 = scalar_select 0, %s6, %s4
  $region1: #{tpu_custom_call.1} parent=0
    #allocation2 [shape = 'u8[8192]{0}', space=vmem, size = 0x2000, scoped, tag = 'input window, operand 0, single buffered']
    #allocation3 [shape = 's32[1]{0}', space=sflag, size = 0x4, scoped, tag = 'scoped memory for tpu_custom_call.1']
    #allocation4 [shape = 's32[1]{0}', space=sflag, size = 0x4, scoped, tag = 'scoped memory for tpu_custom_call.1']
    #allocation5 [shape = 'u8[8192]{0}', space=vmem, size = 0x2000, scoped, tag = 'input window, operand 1, single buffered']
    #allocation6 [shape = 's32[1]{0}', space=sflag, size = 0x4, scoped, tag = 'scoped memory for tpu_custom_call.1']
    #allocation7 [shape = 'u8[8192]{0}', space=vmem, size = 0x2000, scoped, tag = 'output window, operand 0, single buffered']
    %8 = vsyncpa [#allocation3], 0
    %9 = vsyncpa [#allocation6], 0
    %10 = vsyncpa [#allocation4], 0
    // Predicated region
    $region2: #{tpu_custom_call.1} parent=1 // pred_check
      _
    $region3: #{tpu_custom_call.1} parent=1 // pred_check_branch
      %12 = sbr.rel (0) target = $region5
    $region4: #{tpu_custom_call.1} parent=1 // pred_region
      %s14 = ssub.s32 256, 32
      %15 = vsyncadd [#allocation3], %s14
      %s16 = sshll.u32 [#allocation2], 4
      %s17 = int_to_ptr.vmem [resolvable:$true] %s16
      %22 = dma.hbm_to_vmem [thread:$0]  %s0, 32, %s17, [#allocation3], 32, 32, 2
    $region5: #{tpu_custom_call.1} parent=1 // pred_fallthru
      _
    // Predicated region
    $region6: #{tpu_custom_call.1} parent=1 // pred_check
      _
    $region7: #{tpu_custom_call.1} parent=1 // pred_check_branch
      %24 = sbr.rel (0) target = $region9
    $region8: #{tpu_custom_call.1} parent=1 // pred_region
      %s26 = ssub.s32 256, 256
      %27 = vsyncadd [#allocation6], %s26
      %s28 = sshll.u32 [#allocation5], 4
      %s29 = int_to_ptr.vmem [resolvable:$true] %s28
      %34 = dma.hbm_to_vmem [thread:$0]  %s1, 256, %s29, [#allocation6], 64, 64, 4
    $region9: #{tpu_custom_call.1} parent=1 // pred_fallthru
      _
    // Predicated region
    $region10: #{tpu_custom_call.1} parent=1 // pred_check
      _
    $region11: #{tpu_custom_call.1} parent=1 // pred_check_branch
      %36 = sbr.rel (0) target = $region13
    $region12: #{tpu_custom_call.1} parent=1 // pred_region
      _
    $region13: #{tpu_custom_call.1} parent=1 // pred_fallthru
      _
    // Predicated region
    $region14: #{tpu_custom_call.1} parent=1 // pred_check
      _
    $region15: #{tpu_custom_call.1} parent=1 // pred_check_branch
      %38 = sbr.rel (0) target = $region17
    $region16: #{tpu_custom_call.1} parent=1 // pred_region
      %39 = dma.done [#allocation3], 256
    $region17: #{tpu_custom_call.1} parent=1 // pred_fallthru
      _
    // Predicated region
    $region18: #{tpu_custom_call.1} parent=1 // pred_check
      _
    $region19: #{tpu_custom_call.1} parent=1 // pred_check_branch
      %41 = sbr.rel (0) target = $region21
    $region20: #{tpu_custom_call.1} parent=1 // pred_region
      %42 = dma.done [#allocation6], 256
    $region21: #{tpu_custom_call.1} parent=1 // pred_fallthru
      _
    %v44 = vld [vmem:[#allocation2] sm:$0xff]
    %v45 = vld [vmem:[#allocation2 + $0x8] sm:$0xff]
    %v46 = vpack.c.bf16 %v45, %v44
    %v47 = vld [vmem:[#allocation5] sm:$0xf]
    %v48 = vld [vmem:[#allocation5 + $0x4] sm:$0xf]
    %v49 = vld [vmem:[#allocation5 + $0x8] sm:$0xf]
    %v50 = vld [vmem:[#allocation5 + $0xc] sm:$0xf]
    %v51 = vld [vmem:[%s2] sm:$0x1]
    %v53 = vlaneseq
    %v54 = vshrl.u32 %v53, 7
    %v55 = vsub.s32 0, %v54
    %v56 = vrot.slane %v51, %v55
    %v62 = vunpack.c.l.b16 %v47
    %v63 = vunpack.c.l.b16 %v48
    %v64 = vunpack.c.l.b16 %v49
    %v65 = vunpack.c.l.b16 %v50
    %v66 = vpack.c.b16 %v63, %v62
    %v67 = vpack.c.b16 %v65, %v64
    %vm70 = vcmask 261120
    %v72 = vsel %vm70, %v46, 0
    %74 = vmatprep.subr.bf16.mxu0 0
    %75 = vmatpush1.bf16.msra.mxu0 %v66
    %76 = vmatprep.subr.bf16.mxu0 0
    %77 = vmatpush1.bf16.msra.mxu0 %v67
    %78 = vmatprep.subr.bf16.mxu0 0
    %79 = vmatpush1.bf16.msra.mxu0 0
    %80 = vmatprep.subr.bf16.mxu0 0
    %81 = vmatpush1.bf16.msra.mxu0 0
    %82 = vmatprep.subr.bf16.mxu0 0
    %83 = vmatpush1.bf16.msra.mxu0 0
    %84 = vmatprep.subr.bf16.mxu0 0
    %85 = vmatpush1.bf16.msra.mxu0 0
    %86 = vmatprep.subr.bf16.mxu0 0
    %87 = vmatpush1.bf16.msra.mxu0 0
    %88 = vmatprep.subr.bf16.mxu0 0
    %89 = vmatpush1.bf16.msra.mxu0 0
    %90 = vmatprep.subr.bf16.mxu0 0
    %91 = vmatpush1.bf16.msra.mxu0 0
    %92 = vmatprep.subr.bf16.mxu0 0
    %93 = vmatpush1.bf16.msra.mxu0 0
    %94 = vmatprep.subr.bf16.mxu0 0
    %95 = vmatpush1.bf16.msra.mxu0 0
    %96 = vmatprep.subr.bf16.mxu0 0
    %97 = vmatpush1.bf16.msra.mxu0 0
    %98 = vmatprep.subr.bf16.mxu0 0
    %99 = vmatpush1.bf16.msra.mxu0 0
    %100 = vmatprep.subr.bf16.mxu0 0
    %101 = vmatpush1.bf16.msra.mxu0 0
    %102 = vmatprep.subr.bf16.mxu0 0
    %103 = vmatpush1.bf16.msra.mxu0 0
    %104 = vmatprep.subr.bf16.mxu0 0
    %105 = vmatpush1.bf16.msra.mxu0 0
    %106 = vmatprep.mubr.bf16.mxu0 0
    %107 = vmatmul.mubr.bf16.gmra.mrb[0].mxu0 %v72
    %v108 = vpop.f32.mrb[0].mxu0
    %v109 = vadd.f32 %v56, %v108
    %v110 = vpop.f32.mrb[0].mxu0
    %v111 = vpop.f32.mrb[0].mxu0
    %v112 = vadd.f32 %v56, %v111
    %v113 = vpop.f32.mrb[0].mxu0
    %114 = vdwg.mxu0
    %115 = vst [vmem:[#allocation7] sm:$0xff] %v109
    %116 = vst [vmem:[#allocation7 + $0x8] sm:$0xff] %v112
    // Predicated region
    $region22: #{tpu_custom_call.1} parent=1 // pred_check
      _
    $region23: #{tpu_custom_call.1} parent=1 // pred_check_branch
      %118 = sbr.rel (0) target = $region25
    $region24: #{tpu_custom_call.1} parent=1 // pred_region
      %s120 = ssub.s32 256, 32
      %121 = vsyncadd [#allocation4], %s120
      %s122 = sshll.u32 [#allocation7], 4
      %s123 = int_to_ptr.vmem [resolvable:$true] %s122
      %128 = dma.vmem_to_hbm [thread:$0]  %s123, 32, %s3, [#allocation4], 32, 32, 2
    $region25: #{tpu_custom_call.1} parent=1 // pred_fallthru
      _
    // Predicated region
    $region26: #{tpu_custom_call.1} parent=1 // pred_check
      _
    $region27: #{tpu_custom_call.1} parent=1 // pred_check_branch
      %130 = sbr.rel (0) target = $region29
    $region28: #{tpu_custom_call.1} parent=1 // pred_region
      %131 = dma.done [#allocation4], 256
    $region29: #{tpu_custom_call.1} parent=1 // pred_fallthru
      _
    %132 = vsyncpa [#allocation3], 1
    %133 = vsyncpa [#allocation6], 1
    %134 = vsyncpa [#allocation4], 1

</llo_original>
